<compile_context>
chip_gen: v5e
topology: v5e:2x2
jax: 0.10.0
libtpu: 0.0.40
codegen_flags: <defaults>
</compile_context>

<pallas_src>
import functools

import jax
import jax.numpy as jnp
from jax.experimental import pallas as pl
from jax.experimental.pallas import tpu as pltpu

EPS = 1e-5      # PyTorch F.instance_norm default eps
LANE = 128      # vreg lane width


def _round_up(n: int, m: int) -> int:
    return ((n + m - 1) // m) * m


def _sublane_step(itemsize: int) -> int:
    # f32 -> 8, bf16/f16 -> 16, int8/fp8 -> 32 (sublane packing).
    return max(8, 32 // itemsize)


def _device_tiling_params():
    """Per-generation (block_budget_bytes, vmem_limit_bytes, min_grid_steps)."""
    try:
        kind = jax.devices()[0].device_kind.lower()
    except Exception:
        kind = ""
    if "v7" in kind:
        # v7x: 64 MiB physical VMEM, 2 TCs/chip -> smaller blocks, more steps.
        return 3 * 1024 * 1024, 28 * 1024 * 1024, 8
    # v5e / v6e / v4 etc.: 128 MiB VMEM, single TC -> bigger blocks.
    return 7 * 1024 * 1024, 64 * 1024 * 1024, 4


def _pick_row_tile(rows_pad, hw_pad, itemsize, budget, min_steps, sub):
    """Largest multiple of `sub` that divides rows_pad, keeps one
    (tile, hw_pad) block under the budget, and leaves >= min_steps grid steps
    when possible (never below the minimum `sub` rows)."""
    max_by_budget = budget // max(1, hw_pad * itemsize)
    max_by_steps = rows_pad // max(1, min_steps)
    cap = max(sub, (min(max_by_budget, max_by_steps) // sub) * sub)
    tile = sub
    cand = sub
    while cand <= min(rows_pad, cap):
        if rows_pad % cand == 0:
            tile = cand
        cand += sub
    return tile


# ---------------------------------------------------------------------------
# Kernels
# ---------------------------------------------------------------------------

def _adain_fused_kernel(x_ref, ss_ref, o_ref, *, hw_true):
    """Fast path: full (padded) HW in one block.

    x_ref: (ROWS, HW_pad); ss_ref: (ROWS, 2) = [scale, shift]; o_ref like x_ref.
    """
    x = x_ref[...].astype(jnp.float32)
    ss = ss_ref[...].astype(jnp.float32)
    scale = ss[:, 0:1]
    shift = ss[:, 1:2]

    inv_n = jnp.float32(1.0 / hw_true)
    mean = jnp.sum(x, axis=-1, keepdims=True) * inv_n        # (ROWS, 1)
    xc = x - mean
    if hw_true == x.shape[-1]:
        # No lane padding: use the centered (numerically safer) variance.
        var = jnp.sum(xc * xc, axis=-1, keepdims=True) * inv_n
    else:
        # Lane padding is zero-filled, so raw sums over the padded block equal
        # sums over the true HW columns; centered xc would pollute them.
        sumsq = jnp.sum(x * x, axis=-1, keepdims=True)
        var = jnp.maximum(sumsq * inv_n - mean * mean, 0.0)

    # Fold rsqrt and the style scale into a single (ROWS, 1) column before the
    # full-tile ops; rsqrt runs on the EUP and only on a column.
    s = jax.lax.rsqrt(var + EPS) * scale
    o_ref[...] = (xc * s + shift).astype(o_ref.dtype)


def _adain_stats_kernel(x_ref, stats_ref, *, hw_true):
    """Large-HW pass 1: accumulate per-row sum / sum-of-squares over HW chunks,
    finalize to [mean, rstd] on the last chunk. stats_ref: (ROWS, 2) f32."""
    c = pl.program_id(1)

    @pl.when(c == 0)
    def _():
        stats_ref[...] = jnp.zeros_like(stats_ref)

    x = x_ref[...].astype(jnp.float32)
    s0 = jnp.sum(x, axis=-1, keepdims=True)
    s1 = jnp.sum(x * x, axis=-1, keepdims=True)
    stats_ref[...] += jnp.concatenate([s0, s1], axis=-1)

    @pl.when(c == pl.num_programs(1) - 1)
    def _():
        # TODO(synk): for extreme HW, a centered second pass (or Welford) would
        # be numerically tighter than E[x^2] - E[x]^2; fine for f32 here.
        inv_n = jnp.float32(1.0 / hw_true)
        acc = stats_ref[...]
        mean = acc[:, 0:1] * inv_n
        var = jnp.maximum(acc[:, 1:2] * inv_n - mean * mean, 0.0)
        rstd = jax.lax.rsqrt(var + EPS)
        stats_ref[...] = jnp.concatenate([mean, rstd], axis=-1)


def _adain_apply_kernel(x_ref, p_ref, o_ref):
    """Large-HW pass 2: o = (x - mean) * (rstd*scale) + shift per HW chunk.
    p_ref: (ROWS, 3) = [mean, rstd*scale, shift]."""
    x = x_ref[...].astype(jnp.float32)
    p = p_ref[...]
    mean = p[:, 0:1]
    s = p[:, 1:2]
    shift = p[:, 2:3]
    o_ref[...] = ((x - mean) * s + shift).astype(o_ref.dtype)


# ---------------------------------------------------------------------------
# Wrapper
# ---------------------------------------------------------------------------

def adain(x, w, ww, bw, wb, bb, *, block_budget_bytes=None,
          vmem_limit_bytes=None):
    """x: (B, C, H, W); w: (B, Z); ww/wb: (Z, C) (transposed Linear weights);
    bw/bb: (C,). Matches the PyTorch AdaIN forward."""
    B, C, H, W = x.shape
    HW = H * W
    rows = B * C
    itemsize = jnp.dtype(x.dtype).itemsize

    budget, vmem_limit, min_steps = _device_tiling_params()
    if block_budget_bytes is not None:
        budget = block_budget_bytes
    if vmem_limit_bytes is not None:
        vmem_limit = vmem_limit_bytes

    # Hoisted style projections: one (B,Z)x(Z,C) matmul each (no MXU pushes or
    # transposes inside the bandwidth-bound kernel).
    scale = (w @ ww + bw + 1.0).astype(jnp.float32).reshape(rows, 1)
    shift = (w @ wb + bb).astype(jnp.float32).reshape(rows, 1)

    sub = _sublane_step(itemsize)
    rows_pad = _round_up(rows, sub)
    hw_pad = _round_up(HW, LANE)

    # Does even the minimum sublane-step row block fit the budget?
    chunked = sub * hw_pad * itemsize > budget
    if chunked:
        row_tile = sub
        max_chunk = max(LANE, (budget // (row_tile * itemsize)) // LANE * LANE)
        n_chunks = -(-hw_pad // max_chunk)
        hw_chunk = _round_up(-(-hw_pad // n_chunks), LANE)
        hw_pad = hw_chunk * n_chunks
    else:
        row_tile = _pick_row_tile(rows_pad, hw_pad, itemsize, budget,
                                  min_steps, sub)
        hw_chunk = hw_pad
        n_chunks = 1

    # Wrapper-side padding: rows to the sublane step, HW to a lane multiple
    # (lane-dense unmasked stores); padded region is zero and sliced off.
    x2 = x.reshape(rows, HW)
    if rows_pad != rows or hw_pad != HW:
        x2 = jnp.pad(x2, ((0, rows_pad - rows), (0, hw_pad - HW)))
    if rows_pad != rows:
        scale = jnp.pad(scale, ((0, rows_pad - rows), (0, 0)))
        shift = jnp.pad(shift, ((0, rows_pad - rows), (0, 0)))

    if not chunked:
        ss = jnp.concatenate([scale, shift], axis=-1)            # (rows_pad, 2)
        grid = (rows_pad // row_tile,)
        out = pl.pallas_call(
            functools.partial(_adain_fused_kernel, hw_true=HW),
            out_shape=jax.ShapeDtypeStruct((rows_pad, hw_pad), x.dtype),
            grid_spec=pltpu.PrefetchScalarGridSpec(
                num_scalar_prefetch=0,
                grid=grid,
                in_specs=[
                    pl.BlockSpec((row_tile, hw_pad), lambda r: (r, 0)),
                    pl.BlockSpec((row_tile, 2), lambda r: (r, 0)),
                ],
                out_specs=pl.BlockSpec((row_tile, hw_pad), lambda r: (r, 0)),
            ),
            compiler_params=pltpu.CompilerParams(
                dimension_semantics=("parallel",),
                vmem_limit_bytes=vmem_limit,
            ),
            cost_estimate=pl.CostEstimate(
                flops=5 * rows_pad * hw_pad,
                transcendentals=rows_pad,
                bytes_accessed=2 * rows_pad * hw_pad * itemsize,
            ),
        )(x2, ss)
    else:
        grid = (rows_pad // row_tile, n_chunks)
        # Pass 1: per-row mean / rstd over HW chunks.
        stats = pl.pallas_call(
            functools.partial(_adain_stats_kernel, hw_true=HW),
            out_shape=jax.ShapeDtypeStruct((rows_pad, 2), jnp.float32),
            grid_spec=pltpu.PrefetchScalarGridSpec(
                num_scalar_prefetch=0,
                grid=grid,
                in_specs=[
                    pl.BlockSpec((row_tile, hw_chunk), lambda r, c: (r, c)),
                ],
                out_specs=pl.BlockSpec((row_tile, 2), lambda r, c: (r, 0)),
            ),
            compiler_params=pltpu.CompilerParams(
                dimension_semantics=("parallel", "arbitrary"),
                vmem_limit_bytes=vmem_limit,
            ),
            cost_estimate=pl.CostEstimate(
                flops=3 * rows_pad * hw_pad,
                transcendentals=rows_pad,
                bytes_accessed=rows_pad * hw_pad * itemsize,
            ),
        )(x2)
        mean = stats[:, 0:1]
        rstd = stats[:, 1:2]
        params = jnp.concatenate([mean, rstd * scale, shift], axis=-1)  # (rows_pad, 3)
        # Pass 2: normalize + affine per HW chunk.
        out = pl.pallas_call(
            _adain_apply_kernel,
            out_shape=jax.ShapeDtypeStruct((rows_pad, hw_pad), x.dtype),
            grid_spec=pltpu.PrefetchScalarGridSpec(
                num_scalar_prefetch=0,
                grid=grid,
                in_specs=[
                    pl.BlockSpec((row_tile, hw_chunk), lambda r, c: (r, c)),
                    pl.BlockSpec((row_tile, 3), lambda r, c: (r, 0)),
                ],
                out_specs=pl.BlockSpec((row_tile, hw_chunk), lambda r, c: (r, c)),
            ),
            compiler_params=pltpu.CompilerParams(
                dimension_semantics=("parallel", "arbitrary"),
                vmem_limit_bytes=vmem_limit,
            ),
            cost_estimate=pl.CostEstimate(
                flops=3 * rows_pad * hw_pad,
                transcendentals=0,
                bytes_accessed=2 * rows_pad * hw_pad * itemsize,
            ),
        )(x2, params)

    return out[:rows, :HW].reshape(B, C, H, W)


def adain_ref(x, w, ww, bw, wb, bb):
    """Pure-JAX reference mirroring the PyTorch module."""
    mean = jnp.mean(x, axis=(2, 3), keepdims=True)
    var = jnp.mean((x - mean) ** 2, axis=(2, 3), keepdims=True)
    norm = (x - mean) / jnp.sqrt(var + EPS)
    scale = (w @ ww + bw)[:, :, None, None] + 1.0
    shift = (w @ wb + bb)[:, :, None, None]
    return norm * scale + shift


if __name__ == "__main__":
    B, C, H, W = 2, 4, 16, 16   # dim = C
    Z = 8                       # z_dim

    key = jax.random.PRNGKey(0)
    kx, kw, k1, k2, k3, k4 = jax.random.split(key, 6)

    x = jax.random.normal(kx, (B, C, H, W), dtype=jnp.float32)
    w = jax.random.normal(kw, (B, Z), dtype=jnp.float32)

    # Synthetic nn.Linear(z_dim, dim) x2 parameters, stored transposed (Z, C).
    ww = 0.1 * jax.random.normal(k1, (Z, C), dtype=jnp.float32)
    bw = 0.1 * jax.random.normal(k2, (C,), dtype=jnp.float32)
    wb = 0.1 * jax.random.normal(k3, (Z, C), dtype=jnp.float32)
    bb = 0.1 * jax.random.normal(k4, (C,), dtype=jnp.float32)

    # 1) Fused fast path (aligned shapes).
    out = adain(x, w, ww, bw, wb, bb)
    jax.block_until_ready(out)
    ref = adain_ref(x, w, ww, bw, wb, bb)
    assert jnp.allclose(out, ref, atol=1e-4, rtol=1e-4), "fused path mismatch"

    # 2) Padded fast path (rows % 8 != 0, HW % 128 != 0).
    x_odd = jax.random.normal(kx, (2, 3, 7, 7), dtype=jnp.float32)
    ww3 = 0.1 * jax.random.normal(k1, (Z, 3), dtype=jnp.float32)
    bw3 = 0.1 * jax.random.normal(k2, (3,), dtype=jnp.float32)
    wb3 = 0.1 * jax.random.normal(k3, (Z, 3), dtype=jnp.float32)
    bb3 = 0.1 * jax.random.normal(k4, (3,), dtype=jnp.float32)
    out_odd = adain(x_odd, w, ww3, bw3, wb3, bb3)
    ref_odd = adain_ref(x_odd, w, ww3, bw3, wb3, bb3)
    assert jnp.allclose(out_odd, ref_odd, atol=1e-4, rtol=1e-4), \
        "padded path mismatch"

    # 3) Chunked large-HW path, forced by a tiny per-block budget.
    out_chunk = adain(x, w, ww, bw, wb, bb, block_budget_bytes=4096)
    assert jnp.allclose(out_chunk, ref, atol=1e-4, rtol=1e-4), \
        "chunked path mismatch"

    jax.block_until_ready((out, out_odd, out_chunk))
    print("KERNEL_OK")
</pallas_src>

<mosaic_0001>
module attributes {stable_mosaic.version = 11 : i64} {
  func.func @_adain_fused_kernel(%arg0: i32, %arg1: memref<8x256xf32, #tpu.memory_space<vmem>>, %arg2: memref<8x2xf32, #tpu.memory_space<vmem>>, %arg3: memref<8x256xf32, #tpu.memory_space<vmem>>) attributes {dimension_semantics = [#tpu.dimension_semantics<parallel>], iteration_bounds = array<i64: 1>, scalar_prefetch = 0 : i64, scratch_operands = 0 : i64, tpu.core_type = #tpu.core_type<tc>, window_params = [{transform_indices = @transform_0, window_bounds = array<i64: 8, 256>}, {transform_indices = @transform_1, window_bounds = array<i64: 8, 2>}, {transform_indices = @transform_2, window_bounds = array<i64: 8, 256>}]} {
    %c0 = arith.constant 0 : index
    %c0_0 = arith.constant 0 : index
    %0 = vector.load %arg1[%c0, %c0_0] : memref<8x256xf32, #tpu.memory_space<vmem>>, vector<8x256xf32>
    %c0_1 = arith.constant 0 : index
    %c0_2 = arith.constant 0 : index
    %1 = vector.load %arg2[%c0_1, %c0_2] : memref<8x2xf32, #tpu.memory_space<vmem>>, vector<8x2xf32>
    %2 = vector.extract_strided_slice %1 {offsets = [0, 0], sizes = [8, 1], strides = [1, 1]} : vector<8x2xf32> to vector<8x1xf32>
    %3 = vector.extract_strided_slice %1 {offsets = [0, 1], sizes = [8, 1], strides = [1, 1]} : vector<8x2xf32> to vector<8x1xf32>
    %cst = arith.constant dense<0.000000e+00> : vector<8xf32>
    %4 = vector.multi_reduction <add>, %0, %cst [1] : vector<8x256xf32> to vector<8xf32>
    %5 = vector.shape_cast %4 : vector<8xf32> to vector<8x1xf32>
    %cst_3 = arith.constant 3.906250e-03 : f32
    %6 = vector.broadcast %cst_3 : f32 to vector<8x1xf32>
    %7 = arith.mulf %5, %6 : vector<8x1xf32>
    %8 = vector.broadcast %7 : vector<8x1xf32> to vector<8x256xf32>
    %9 = arith.subf %0, %8 : vector<8x256xf32>
    %10 = arith.mulf %9, %9 : vector<8x256xf32>
    %cst_4 = arith.constant dense<0.000000e+00> : vector<8xf32>
    %11 = vector.multi_reduction <add>, %10, %cst_4 [1] : vector<8x256xf32> to vector<8xf32>
    %12 = vector.shape_cast %11 : vector<8xf32> to vector<8x1xf32>
    %cst_5 = arith.constant 3.906250e-03 : f32
    %13 = vector.broadcast %cst_5 : f32 to vector<8x1xf32>
    %14 = arith.mulf %12, %13 : vector<8x1xf32>
    %cst_6 = arith.constant 9.99999974E-6 : f32
    %15 = vector.broadcast %cst_6 : f32 to vector<8x1xf32>
    %16 = arith.addf %14, %15 : vector<8x1xf32>
    %17 = math.rsqrt %16 : vector<8x1xf32>
    %18 = arith.mulf %17, %2 : vector<8x1xf32>
    %19 = vector.broadcast %18 : vector<8x1xf32> to vector<8x256xf32>
    %20 = arith.mulf %9, %19 : vector<8x256xf32>
    %21 = vector.broadcast %3 : vector<8x1xf32> to vector<8x256xf32>
    %22 = arith.addf %20, %21 : vector<8x256xf32>
    %c0_7 = arith.constant 0 : index
    %c0_8 = arith.constant 0 : index
    %23 = vector.load %arg3[%c0_7, %c0_8] : memref<8x256xf32, #tpu.memory_space<vmem>>, vector<8x256xf32>
    tpu.vector_store %arg3[%c0_7, %c0_8], %22 {strides = array<i32>} : memref<8x256xf32, #tpu.memory_space<vmem>>, vector<8x256xf32>,
    return
  }
  func.func @transform_0(%arg0: i32) -> (i32, i32) {
    %c0_i32 = arith.constant 0 : i32
    %c0_i32_0 = arith.constant 0 : i32
    return %arg0, %c0_i32 : i32, i32
  }
  func.func @transform_1(%arg0: i32) -> (i32, i32) {
    %c0_i32 = arith.constant 0 : i32
    %c0_i32_0 = arith.constant 0 : i32
    return %arg0, %c0_i32 : i32, i32
  }
  func.func @transform_2(%arg0: i32) -> (i32, i32) {
    %c0_i32 = arith.constant 0 : i32
    %c0_i32_0 = arith.constant 0 : i32
    return %arg0, %c0_i32 : i32, i32
  }
}

</mosaic_0001>

<llo_original>
// kernel: tpu_custom_call.1
$region0: #{tpu_custom_call.1}
  #allocation0 [shape = 'u32[]', space=smem, size = 0x4, offset = 0x4, fixed_abs, tag = 'smem constant byte address 0x4 - core index']
  #allocation1 [shape = 'u32[72,128]{1,0:T(1,128)}', space=vmem, size = 0x9000, scoped, tag = 'internal scratch']
  %s0 = inlined_call_operand.hbm [shape: f32[8,256], index: 0, kind: input, shape index: {}]
  %s1 = inlined_call_operand.vmem [shape: f32[8,2], index: 1, kind: input, shape index: {}]
  %s2 = inlined_call_operand.hbm [shape: f32[8,256], index: 2, kind: output, shape index: {}]
  %s3 = sld [smem:[#allocation0]]
  $region22: #{tpu_custom_call.1} parent=0
    _
  %s5 = ssub.s32 1, %s3
  %s6 = scalar_select 0, %s5, %s3
  $region1: #{tpu_custom_call.1} parent=0
    #allocation2 [shape = 'u8[8192]{0}', space=vmem, size = 0x2000, scoped, tag = 'input window, operand 0, single buffered']
    #allocation3 [shape = 's32[1]{0}', space=sflag, size = 0x4, scoped, tag = 'scoped memory for tpu_custom_call.1']
    #allocation4 [shape = 's32[1]{0}', space=sflag, size = 0x4, scoped, tag = 'scoped memory for tpu_custom_call.1']
    #allocation5 [shape = 'u8[8192]{0}', space=vmem, size = 0x2000, scoped, tag = 'output window, operand 0, single buffered']
    %7 = vsyncpa [#allocation3], 0
    %8 = vsyncpa [#allocation4], 0
    // Predicated region
    $region2: #{tpu_custom_call.1} parent=1 // pred_check
      _
    $region3: #{tpu_custom_call.1} parent=1 // pred_check_branch
      %10 = sbr.rel (0) target = $region5
    $region4: #{tpu_custom_call.1} parent=1 // pred_region
      %12 = vsyncadd [#allocation3], 0
      %s14 = sshll.u32 %s0, 4
      %s15 = int_to_ptr.hbm [resolvable:$true] %s14
      %s16 = sshll.u32 [#allocation2], 4
      %s17 = int_to_ptr.vmem [resolvable:$true] %s16
      %19 = dma.hbm_to_vmem [thread:$0]  %s15, 256, %s17, [#allocation3]
    $region5: #{tpu_custom_call.1} parent=1 // pred_fallthru
      _
    // Predicated region
    $region6: #{tpu_custom_call.1} parent=1 // pred_check
      _
    $region7: #{tpu_custom_call.1} parent=1 // pred_check_branch
      %21 = sbr.rel (0) target = $region9
    $region8: #{tpu_custom_call.1} parent=1 // pred_region
      _
    $region9: #{tpu_custom_call.1} parent=1 // pred_fallthru
      _
    // Predicated region
    $region10: #{tpu_custom_call.1} parent=1 // pred_check
      _
    $region11: #{tpu_custom_call.1} parent=1 // pred_check_branch
      %23 = sbr.rel (0) target = $region13
    $region12: #{tpu_custom_call.1} parent=1 // pred_region
      %25 = dma.done [#allocation3], 256
    $region13: #{tpu_custom_call.1} parent=1 // pred_fallthru
      _
    %v26 = vld [vmem:[#allocation2] sm:$0xff]
    %v27 = vld [vmem:[#allocation2 + $0x8] sm:$0xff]
    %v28 = vld [vmem:[%s1] sm:$0xff]
    %v29 = vadd.f32 %v26, %v27
    %30 = vadd.xlane.f32.xlu0 %v29
    %v31 = vpop.xlane.xlu0 %30
    %v32 = vmul.f32 %v31, 0.00390625
    %v33 = vsub.f32 %v26, %v32
    %v34 = vsub.f32 %v27, %v32
    %v35 = vmul.f32 %v33, %v33
    %v36 = vmul.f32 %v34, %v34
    %v37 = vadd.f32 %v35, %v36
    %38 = vadd.xlane.f32.xlu0 %v37
    %v39 = vpop.xlane.xlu0 %38
    %v40 = vmul.f32 %v39, 0.00390625
    %v41 = vadd.f32 %v40, 1e-05
    %v42 = vrsqrt.pop %v41
    %v43 = vmul.f32 %v42, %v41
    %v44 = vmul.f32 %v43, %v42
    %v45 = vmul.f32 0.5, %v44
    %v46 = vsub.f32 1.5, %v45
    %v47 = vmul.f32 %v42, %v46
    %vm48 = vweird.f32 %v41
    %vm49 = vweird.f32 %v42
    %vm50 = vmor %vm48, %vm49
    %v51 = vsel %vm50, %v42, %v47
    %v52 = vmul.f32 %v51, %v28
    %54 = vset.pattern.permute.xlu0 0
    %55 = vperm.xlu0 %54, %v52
    %v56 = vpop.permute.xlu0 %55
    %v58 = vmul.f32 %v33, %v56
    %v59 = vmul.f32 %v34, %v56
    %61 = vset.pattern.permute.xlu0 1
    %62 = vperm.xlu0 %61, %v28
    %v63 = vpop.permute.xlu0 %62
    %v65 = vadd.f32 %v58, %v63
    %v66 = vadd.f32 %v59, %v63
    %67 = vst [vmem:[#allocation5] sm:$0xff] %v65
    %68 = vst [vmem:[#allocation5 + $0x8] sm:$0xff] %v66
    // Predicated region
    $region14: #{tpu_custom_call.1} parent=1 // pred_check
      _
    $region15: #{tpu_custom_call.1} parent=1 // pred_check_branch
      %70 = sbr.rel (0) target = $region17
    $region16: #{tpu_custom_call.1} parent=1 // pred_region
      %72 = vsyncadd [#allocation4], 0
      %s74 = sshll.u32 [#allocation5], 4
      %s75 = int_to_ptr.vmem [resolvable:$true] %s74
      %s76 = sshll.u32 %s2, 4
      %s77 = int_to_ptr.hbm [resolvable:$true] %s76
      %79 = dma.vmem_to_hbm [thread:$0]  %s75, 256, %s77, [#allocation4]
    $region17: #{tpu_custom_call.1} parent=1 // pred_fallthru
      _
    // Predicated region
    $region18: #{tpu_custom_call.1} parent=1 // pred_check
      _
    $region19: #{tpu_custom_call.1} parent=1 // pred_check_branch
      %81 = sbr.rel (0) target = $region21
    $region20: #{tpu_custom_call.1} parent=1 // pred_region
      %83 = dma.done [#allocation4], 256
    $region21: #{tpu_custom_call.1} parent=1 // pred_fallthru
      _
    %84 = vsyncpa [#allocation3], 1
    %85 = vsyncpa [#allocation4], 1

</llo_original>
